<compile_context>
chip_gen: v6e
topology: v6e:2x2x1
jax: 0.10.0
libtpu: 0.0.40
codegen_flags: <defaults>
</compile_context>

<pallas_src>
import jax
import jax.numpy as jnp
from jax import lax
from jax.experimental import pallas as pl
from jax.experimental.pallas import tpu as pltpu


def _round_up(x, m):
    return ((x + m - 1) // m) * m


def _pick_block_b(batch, seq, hidden, a_pad, n_heads, itemsize,
                  target_bytes=2 << 20):
    """Largest divisor of `batch` whose per-step VMEM footprint stays ~MiB-scale
    while leaving a grid of >= 4 steps (>= 2 for tiny batches), so the BlockSpec
    pipeline has prefetch/writeback to overlap and v7x's 2 TCs both get steps.
    The ~2 MiB target also stays far below the v5e 16 MiB scoped-VMEM default,
    so no vmem_limit_bytes override is needed on any generation."""
    def step_bytes(bb):
        io = 2 * bb * (seq * hidden + n_heads * hidden + n_heads * seq)  # dbl-buffered
        scratch = bb * seq * a_pad
        return (io + scratch) * itemsize

    min_grid = 4 if batch >= 4 else (2 if batch >= 2 else 1)
    divisors = [d for d in range(1, batch + 1) if batch % d == 0]
    fitting = [d for d in divisors if step_bytes(d) <= target_bytes]
    good = [d for d in fitting if batch // d >= min_grid]
    if good:
        return max(good)
    if fitting:
        return max(fitting)
    return 1


def _self_attention_kernel(h_ref, w1_ref, w2_ref, m_ref, a_ref, x1_ref):
    """One grid step processes a block of Bt batch rows.

    h_ref : (Bt, S, H)     hidden in (batch, seq, hidden) layout
    w1_ref: (H, Apad)      W1 pre-transposed, attention dim zero-padded to 128
    w2_ref: (NH, Apad)     W2, attention dim zero-padded to 128
    m_ref : (Bt, NH, H)    output M
    a_ref : (Bt, NH, S)    output attention weights (lane-dense, S on lanes)
    x1_ref: (Bt, S, Apad)  VMEM scratch for tanh(hidden @ W1^T)
    """
    bt, s, h_dim = h_ref.shape
    a_pad = w1_ref.shape[1]
    cdt = h_ref.dtype                     # compute dtype for MXU inputs

    # ---- Stage 1: one big MXU matmul over all Bt*S rows of the block --------
    # Flattening batch into the M dim fills the MXU instead of pushing S-row
    # slivers per batch element; result goes to VMEM scratch (bounded live range).
    h_flat = h_ref[...].reshape(bt * s, h_dim)
    x1 = jnp.tanh(jnp.dot(h_flat, w1_ref[...],
                          preferred_element_type=jnp.float32))     # (Bt*S, Apad) f32
    x1_ref[...] = x1.reshape(bt, s, a_pad).astype(x1_ref.dtype)

    # Loop-invariant weight load (grid-invariant index_map -> not re-DMA'd).
    w2 = w2_ref[...]                                               # (NH, Apad)

    # ---- Stage 2: per-batch softmax over seq + M, in (NH, S) orientation ----
    def body(b, carry):
        h_b = h_ref[b]                                             # (S, H)
        x1_b = x1_ref[b]                                           # (S, Apad)

        # scores = W2 @ x1^T computed directly as (NH, S): lane-dense output,
        # softmax/exp/reductions run on full 128-lane vregs.
        scores = lax.dot_general(
            w2, x1_b,
            dimension_numbers=(((1,), (1,)), ((), ())),
            preferred_element_type=jnp.float32)                    # (NH, S) f32

        # softmax over the sequence axis (PyTorch dim=1) == last axis here.
        s_max = jnp.max(scores, axis=-1, keepdims=True)            # (NH, 1)
        e = jnp.exp(scores - s_max)                                # (NH, S)
        denom = jnp.sum(e, axis=-1, keepdims=True)                 # (NH, 1)
        attn = e / denom                                           # exact; denom tiny

        # M = A @ hidden  ->  (NH, S) @ (S, H); inputs at native dtype, f32 acc.
        m = lax.dot_general(
            attn.astype(cdt), h_b,
            dimension_numbers=(((1,), (0,)), ((), ())),
            preferred_element_type=jnp.float32)                    # (NH, H)

        m_ref[b] = m.astype(m_ref.dtype)
        a_ref[b] = attn.astype(a_ref.dtype)
        return carry

    # fori_loop bounds live ranges for large blocks; unroll only when tiny.
    lax.fori_loop(0, bt, body, 0, unroll=bt <= 8)


def self_attention(hidden_sbh, w1, w2, block_b=None):
    """hidden_sbh: (seq, batch, hidden), w1: (A, H), w2: (NH, A) — nn.Linear weights.
    Returns (M, A) with M: (batch, NH, hidden), A: (batch, NH, seq)."""
    S, B, H = hidden_sbh.shape
    A, H_w = w1.shape
    NH, A_w = w2.shape
    assert H == H_w and A == A_w

    # ---- one-time XLA glue (outside the kernel) -----------------------------
    # (seq, batch, hidden) -> (batch, seq, hidden): the module's own transpose,
    # done once in XLA so all in-kernel accesses are leading-axis indexing.
    hidden_bsh = jnp.transpose(hidden_sbh, (1, 0, 2))              # (B, S, H)

    # Pre-transpose W1 and zero-pad the attention dim to a multiple of 128 so
    # the kernel sees full-lane vregs / clean MXU tiles and no in-kernel .T.
    # (tanh(h @ 0) = 0 and padded W2 columns are 0, so results are exact.)
    a_pad = _round_up(A, 128)
    w1t = jnp.zeros((H, a_pad), w1.dtype).at[:, :A].set(w1.T)      # (H, Apad)
    w2p = jnp.zeros((NH, a_pad), w2.dtype).at[:, :A].set(w2)       # (NH, Apad)

    itemsize = jnp.dtype(hidden_sbh.dtype).itemsize
    if block_b is None:
        block_b = _pick_block_b(B, S, H, a_pad, NH, itemsize)
    assert B % block_b == 0, "block_b must divide batch"
    nb = B // block_b

    out_shapes = (
        jax.ShapeDtypeStruct((B, NH, H), hidden_sbh.dtype),        # M
        jax.ShapeDtypeStruct((B, NH, S), hidden_sbh.dtype),        # A (lane-dense)
    )

    grid_spec = pltpu.PrefetchScalarGridSpec(
        num_scalar_prefetch=0,
        grid=(nb,),
        in_specs=[
            pl.BlockSpec((block_b, S, H), lambda i: (i, 0, 0)),    # hidden block
            pl.BlockSpec((H, a_pad), lambda i: (0, 0)),            # W1^T (whole)
            pl.BlockSpec((NH, a_pad), lambda i: (0, 0)),           # W2 (whole)
        ],
        out_specs=[
            pl.BlockSpec((block_b, NH, H), lambda i: (i, 0, 0)),   # M
            pl.BlockSpec((block_b, NH, S), lambda i: (i, 0, 0)),   # A (B, NH, S)
        ],
        scratch_shapes=[
            pltpu.VMEM((block_b, S, a_pad), hidden_sbh.dtype),     # x1 scratch
        ],
    )

    m_out, a_out = pl.pallas_call(
        _self_attention_kernel,
        out_shape=out_shapes,
        grid_spec=grid_spec,
        compiler_params=pltpu.CompilerParams(
            dimension_semantics=("parallel",)),
    )(hidden_bsh, w1t, w2p)

    # A is already emitted in the final (B, NH, S) layout — no wrapper transpose.
    return m_out, a_out


def _reference(hidden_sbh, w1, w2):
    # pure-JAX reference mirroring the PyTorch forward
    h = jnp.transpose(hidden_sbh, (1, 0, 2))                       # (B, S, H)
    x = jnp.tanh(jnp.einsum("bsh,ah->bsa", h, w1))                 # (B, S, A)
    x = jnp.einsum("bsa,na->bsn", x, w2)                           # (B, S, NH)
    x = jax.nn.softmax(x, axis=1)                                  # softmax over seq
    A = jnp.transpose(x, (0, 2, 1))                                # (B, NH, S)
    M = jnp.einsum("bns,bsh->bnh", A, h)                           # (B, NH, H)
    return M, A


if __name__ == "__main__":
    # Small shapes consistent with the module: seq=8, batch=2, hidden=32.
    # (At these demo sizes plain fused XLA would be faster than any kernel;
    #  the Pallas path pays off once B*S*H is HBM-bandwidth-scale.)
    seq, batch, hidden_size = 8, 2, 32
    attention_size, n_heads = 100, 1

    key = jax.random.PRNGKey(0)
    k_h, k_w1, k_w2 = jax.random.split(key, 3)

    hidden = jax.random.normal(k_h, (seq, batch, hidden_size), dtype=jnp.float32)
    # nn.Linear weight shapes: (out_features, in_features)
    w1 = jax.random.normal(k_w1, (attention_size, hidden_size), dtype=jnp.float32) * 0.1
    w2 = jax.random.normal(k_w2, (n_heads, attention_size), dtype=jnp.float32) * 0.1

    M, A = self_attention(hidden, w1, w2)
    M = jax.block_until_ready(M)
    A = jax.block_until_ready(A)

    M_ref, A_ref = _reference(hidden, w1, w2)
    assert jnp.allclose(M, M_ref, atol=1e-5, rtol=1e-5), "M mismatch vs reference"
    assert jnp.allclose(A, A_ref, atol=1e-5, rtol=1e-5), "A mismatch vs reference"

    print("KERNEL_OK")
</pallas_src>

<mosaic_0001>
module attributes {stable_mosaic.version = 11 : i64} {
  func.func @_self_attention_kernel(%arg0: i32, %arg1: memref<1x8x32xf32, #tpu.memory_space<vmem>>, %arg2: memref<32x128xf32, #tpu.memory_space<vmem>>, %arg3: memref<1x128xf32, #tpu.memory_space<vmem>>, %arg4: memref<1x1x32xf32, #tpu.memory_space<vmem>>, %arg5: memref<1x1x8xf32, #tpu.memory_space<vmem>>, %arg6: memref<1x8x128xf32, #tpu.memory_space<vmem>>) attributes {dimension_semantics = [#tpu.dimension_semantics<parallel>], iteration_bounds = array<i64: 2>, scalar_prefetch = 0 : i64, scratch_operands = 1 : i64, tpu.core_type = #tpu.core_type<tc>, window_params = [{transform_indices = @transform_0, window_bounds = array<i64: 1, 8, 32>}, {pipeline_mode = #tpu.pipeline_mode<synchronous>, transform_indices = @transform_1, window_bounds = array<i64: 32, 128>}, {pipeline_mode = #tpu.pipeline_mode<synchronous>, transform_indices = @transform_2, window_bounds = array<i64: 1, 128>}, {transform_indices = @transform_3, window_bounds = array<i64: 1, 1, 32>}, {transform_indices = @transform_4, window_bounds = array<i64: 1, 1, 8>}]} {
    %c0 = arith.constant 0 : index
    %c0_0 = arith.constant 0 : index
    %c0_1 = arith.constant 0 : index
    %0 = vector.load %arg1[%c0, %c0_0, %c0_1] : memref<1x8x32xf32, #tpu.memory_space<vmem>>, vector<1x8x32xf32>
    %1 = vector.shape_cast %0 : vector<1x8x32xf32> to vector<8x32xf32>
    %c0_2 = arith.constant 0 : index
    %c0_3 = arith.constant 0 : index
    %2 = vector.load %arg2[%c0_2, %c0_3] : memref<32x128xf32, #tpu.memory_space<vmem>>, vector<32x128xf32>
    %cst = arith.constant dense<0.000000e+00> : vector<8x128xf32>
    %3 = tpu.matmul %1, %2, %cst {dimension_numbers = #tpu.dot_dimension_numbers<[1], [0], [0], [1], [0, 0, 1, 1], [], []>} : vector<8x32xf32>, vector<32x128xf32>, vector<8x128xf32> -> vector<8x128xf32>
    %4 = math.tanh %3 : vector<8x128xf32>
    %5 = vector.shape_cast %4 : vector<8x128xf32> to vector<1x8x128xf32>
    %c0_4 = arith.constant 0 : index
    %c0_5 = arith.constant 0 : index
    %c0_6 = arith.constant 0 : index
    %6 = vector.load %arg6[%c0_4, %c0_5, %c0_6] : memref<1x8x128xf32, #tpu.memory_space<vmem>>, vector<1x8x128xf32>
    tpu.vector_store %arg6[%c0_4, %c0_5, %c0_6], %5 {strides = array<i32>} : memref<1x8x128xf32, #tpu.memory_space<vmem>>, vector<1x8x128xf32>,
    %c0_7 = arith.constant 0 : index
    %c0_8 = arith.constant 0 : index
    %7 = vector.load %arg3[%c0_7, %c0_8] : memref<1x128xf32, #tpu.memory_space<vmem>>, vector<1x128xf32>
    %c0_i32 = arith.constant 0 : i32
    %8 = arith.index_cast %c0_i32 : i32 to index
    %c0_9 = arith.constant 0 : index
    %c0_10 = arith.constant 0 : index
    %9 = vector.load %arg1[%8, %c0_9, %c0_10] : memref<1x8x32xf32, #tpu.memory_space<vmem>>, vector<1x8x32xf32>
    %10 = vector.shape_cast %9 : vector<1x8x32xf32> to vector<8x32xf32>
    %11 = arith.index_cast %c0_i32 : i32 to index
    %c0_11 = arith.constant 0 : index
    %c0_12 = arith.constant 0 : index
    %12 = vector.load %arg6[%11, %c0_11, %c0_12] : memref<1x8x128xf32, #tpu.memory_space<vmem>>, vector<1x8x128xf32>
    %13 = vector.shape_cast %12 : vector<1x8x128xf32> to vector<8x128xf32>
    %cst_13 = arith.constant dense<0.000000e+00> : vector<1x8xf32>
    %14 = tpu.matmul %7, %13, %cst_13 {dimension_numbers = #tpu.dot_dimension_numbers<[1], [1], [0], [0], [0, 0, 1, 0], [], []>} : vector<1x128xf32>, vector<8x128xf32>, vector<1x8xf32> -> vector<1x8xf32>
    %cst_14 = arith.constant dense<0xFF800000> : vector<1xf32>
    %15 = vector.multi_reduction <maximumf>, %14, %cst_14 [1] : vector<1x8xf32> to vector<1xf32>
    %16 = vector.shape_cast %15 : vector<1xf32> to vector<1x1xf32>
    %17 = vector.broadcast %16 : vector<1x1xf32> to vector<1x8xf32>
    %18 = arith.subf %14, %17 : vector<1x8xf32>
    %19 = math.exp %18 : vector<1x8xf32>
    %cst_15 = arith.constant dense<0.000000e+00> : vector<1xf32>
    %20 = vector.multi_reduction <add>, %19, %cst_15 [1] : vector<1x8xf32> to vector<1xf32>
    %21 = vector.shape_cast %20 : vector<1xf32> to vector<1x1xf32>
    %22 = vector.broadcast %21 : vector<1x1xf32> to vector<1x8xf32>
    %23 = arith.divf %19, %22 : vector<1x8xf32>
    %cst_16 = arith.constant dense<0.000000e+00> : vector<1x32xf32>
    %24 = tpu.matmul %23, %10, %cst_16 {dimension_numbers = #tpu.dot_dimension_numbers<[1], [0], [0], [1], [0, 0, 1, 1], [], []>} : vector<1x8xf32>, vector<8x32xf32>, vector<1x32xf32> -> vector<1x32xf32>
    %25 = arith.index_cast %c0_i32 : i32 to index
    %c0_17 = arith.constant 0 : index
    %c0_18 = arith.constant 0 : index
    %26 = vector.load %arg4[%25, %c0_17, %c0_18] : memref<1x1x32xf32, #tpu.memory_space<vmem>>, vector<1x1x32xf32>
    %27 = vector.shape_cast %26 : vector<1x1x32xf32> to vector<1x32xf32>
    %28 = vector.shape_cast %24 : vector<1x32xf32> to vector<1x1x32xf32>
    tpu.vector_store %arg4[%25, %c0_17, %c0_18], %28 {strides = array<i32>} : memref<1x1x32xf32, #tpu.memory_space<vmem>>, vector<1x1x32xf32>,
    %29 = arith.index_cast %c0_i32 : i32 to index
    %c0_19 = arith.constant 0 : index
    %c0_20 = arith.constant 0 : index
    %30 = vector.load %arg5[%29, %c0_19, %c0_20] : memref<1x1x8xf32, #tpu.memory_space<vmem>>, vector<1x1x8xf32>
    %31 = vector.shape_cast %30 : vector<1x1x8xf32> to vector<1x8xf32>
    %32 = vector.shape_cast %23 : vector<1x8xf32> to vector<1x1x8xf32>
    tpu.vector_store %arg5[%29, %c0_19, %c0_20], %32 {strides = array<i32>} : memref<1x1x8xf32, #tpu.memory_space<vmem>>, vector<1x1x8xf32>,
    %c1_i32 = arith.constant 1 : i32
    return
  }
  func.func @transform_0(%arg0: i32) -> (i32, i32, i32) {
    %c0_i32 = arith.constant 0 : i32
    %c0_i32_0 = arith.constant 0 : i32
    %c0_i32_1 = arith.constant 0 : i32
    return %arg0, %c0_i32, %c0_i32_0 : i32, i32, i32
  }
  func.func @transform_1(%arg0: i32) -> (i32, i32) {
    %c0_i32 = arith.constant 0 : i32
    %c0_i32_0 = arith.constant 0 : i32
    %c0_i32_1 = arith.constant 0 : i32
    return %c0_i32, %c0_i32_0 : i32, i32
  }
  func.func @transform_2(%arg0: i32) -> (i32, i32) {
    %c0_i32 = arith.constant 0 : i32
    %c0_i32_0 = arith.constant 0 : i32
    %c0_i32_1 = arith.constant 0 : i32
    return %c0_i32, %c0_i32_0 : i32, i32
  }
  func.func @transform_3(%arg0: i32) -> (i32, i32, i32) {
    %c0_i32 = arith.constant 0 : i32
    %c0_i32_0 = arith.constant 0 : i32
    %c0_i32_1 = arith.constant 0 : i32
    return %arg0, %c0_i32, %c0_i32_0 : i32, i32, i32
  }
  func.func @transform_4(%arg0: i32) -> (i32, i32, i32) {
    %c0_i32 = arith.constant 0 : i32
    %c0_i32_0 = arith.constant 0 : i32
    %c0_i32_1 = arith.constant 0 : i32
    return %arg0, %c0_i32, %c0_i32_0 : i32, i32, i32
  }
}

</mosaic_0001>

<llo_original>
// kernel: tpu_custom_call.1
$region0: #{tpu_custom_call.1}
  #allocation0 [shape = 'u32[]', space=smem, size = 0x4, offset = 0x4, fixed_abs, tag = 'smem constant byte address 0x4 - core index']
  #allocation1 [shape = 'u32[144,128]{1,0:T(1,128)}', space=vmem, size = 0x12000, scoped, tag = 'internal scratch']
  #allocation2 [shape = 'f32[1,8,128]{2,1,0:T(8,128)}', space=vmem, size = 0x1000, scoped, tag = 'scratch operand']
  %s0 = inlined_call_operand.hbm [shape: f32[2,8,32], index: 0, kind: input, shape index: {}]
  %s1 = inlined_call_operand.hbm [shape: f32[32,128], index: 1, kind: input, shape index: {}]
  %s2 = inlined_call_operand.vmem [shape: f32[1,128], index: 2, kind: input, shape index: {}]
  %s3 = inlined_call_operand.hbm [shape: f32[2,1,32], index: 3, kind: output, shape index: {0}]
  %s4 = inlined_call_operand.hbm [shape: f32[2,1,8], index: 4, kind: output, shape index: {1}]
  %5 = xla_tuple %s3, %s4
  %s6 = sld [smem:[#allocation0]]
  $region61: #{tpu_custom_call.1} parent=0
    _
  %s8 = ssub.s32 1, %s6
  %s9 = scalar_select 0, %s8, %s6
  $region1: #{tpu_custom_call.1} parent=0
    #allocation3 [shape = 'u8[8192]{0}', space=vmem, size = 0x2000, scoped, tag = 'input window, operand 0']
    #allocation4 [shape = 's32[2]{0}', space=sflag, size = 0x8, scoped, tag = 'scoped memory for tpu_custom_call.1']
    #allocation5 [shape = 's32[2]{0}', space=sflag, size = 0x8, scoped, tag = 'scoped memory for tpu_custom_call.1']
    #allocation6 [shape = 'u8[16384]{0}', space=vmem, size = 0x4000, scoped, tag = 'input window, operand 1, single buffered']
    #allocation7 [shape = 's32[1]{0}', space=sflag, size = 0x4, scoped, tag = 'scoped memory for tpu_custom_call.1']
    #allocation8 [shape = 'u8[1024]{0}', space=vmem, size = 0x400, scoped, tag = 'output window, operand 0']
    #allocation9 [shape = 'u8[1024]{0}', space=vmem, size = 0x400, scoped, tag = 'output window, operand 1']
    #allocation10 [shape = 's32[2]{0}', space=sflag, size = 0x8, scoped, tag = 'scoped memory for tpu_custom_call.1']
    %10 = vsyncpa [#allocation4], 0
    %s11 = scalar_lea.sflag [#allocation4], 1
    %12 = vsyncpa %s11, 0
    %13 = vsyncpa [#allocation7], 0
    %14 = vsyncpa [#allocation5], 0
    %s15 = scalar_lea.sflag [#allocation5], 1
    %16 = vsyncpa %s15, 0
    %17 = vsyncpa [#allocation10], 0
    %s18 = scalar_lea.sflag [#allocation10], 1
    %19 = vsyncpa %s18, 0
    loop: start=0, step=1, limit=4
    $region2: #{tpu_custom_call.1} parent=1 // loop_pre_header
      _
    $region3: #{tpu_custom_call.1} parent=1 // loop_header
      %s21 = sphi 0, %s25
      %p22 = scmp.ge.s32.totalorder %s21, 4
      %s31 = sphi 0, %s33
      %s34 = sphi 0, %s31
      %s35 = sphi 0, %s34
      %s51 = sphi 0, %s35
      %s55 = sphi 0, %s55
      %s57 = sphi 0, %s55
      %s58 = sphi 0, %s57
      %s72 = sphi 0, %s58
      %s76 = sphi 0, %s76
      %s78 = sphi 0, %s76
      %s79 = sphi 0, %s78
      %s93 = sphi 0, %s79
      %s99 = sphi 0, %s101
      %s102 = sphi 0, %s99
      %s103 = sphi 0, %s102
      %s119 = sphi 0, %s103
      %s125 = sphi 0, %s127
      %s128 = sphi 0, %s125
      %s129 = sphi 0, %s128
      %s145 = sphi 0, %s129
    $region4: #{tpu_custom_call.1} parent=1 // loop_header_branch
      %24 = sbr.rel (%p22) target = $region8
    $region5: #{tpu_custom_call.1} parent=1 // loop_body
      %s26 = ssub.s32 %s21, 1
      %s27 = ssub.s32 %s21, 2
      %s28 = sadd.s32 %s21, 1
      %s29 = ssub.s32 %s21, %s28
      %p30 = scmp.eq.s32.totalorder %s29, 0
      %s32 = sadd.s32 %s31, 1
      %s33 = scalar_select %p30, %s31, %s32
      %p36 = pneg %p30
      %p37 = scmp.eq.s32.totalorder %s21, 1
      %p38 = por %p36, %p37
      %p39 = scmp.ne.s32.totalorder %s31, %s34
      %p40 = scmp.eq.s32.totalorder %s21, 0
      %p41 = por %p39, %p40
      %p42 = scmp.ne.s32.totalorder %s31, %s34
      %p43 = scmp.eq.s32.totalorder %s26, 1
      %p44 = por %p42, %p43
      %p45 = scmp.ne.s32.totalorder %s34, %s35
      %p46 = scmp.eq.s32.totalorder %s26, 0
      %p47 = por %p45, %p46
      %p48 = scmp.ne.s32.totalorder %s34, %s35
      %p49 = scmp.eq.s32.totalorder %s27, 1
      %p50 = por %p48, %p49
      %p52 = scmp.ne.s32.totalorder %s35, %s51
      %p53 = scmp.eq.s32.totalorder %s27, 0
      %p54 = por %p52, %p53
      %s56 = sadd.s32 %s55, 1
      %p59 = scmp.eq.s32.totalorder %s21, 1
      %p60 = scmp.ne.s32.totalorder %s55, %s57
      %p61 = scmp.eq.s32.totalorder %s21, 0
      %p62 = por %p60, %p61
      %p63 = scmp.ne.s32.totalorder %s55, %s57
      %p64 = scmp.eq.s32.totalorder %s26, 1
      %p65 = por %p63, %p64
      %p66 = scmp.ne.s32.totalorder %s57, %s58
      %p67 = scmp.eq.s32.totalorder %s26, 0
      %p68 = por %p66, %p67
      %p69 = scmp.ne.s32.totalorder %s57, %s58
      %p70 = scmp.eq.s32.totalorder %s27, 1
      %p71 = por %p69, %p70
      %p73 = scmp.ne.s32.totalorder %s58, %s72
      %p74 = scmp.eq.s32.totalorder %s27, 0
      %p75 = por %p73, %p74
      %s77 = sadd.s32 %s76, 1
      %p80 = scmp.eq.s32.totalorder %s21, 1
      %p81 = scmp.ne.s32.totalorder %s76, %s78
      %p82 = scmp.eq.s32.totalorder %s21, 0
      %p83 = por %p81, %p82
      %p84 = scmp.ne.s32.totalorder %s76, %s78
      %p85 = scmp.eq.s32.totalorder %s26, 1
      %p86 = por %p84, %p85
      %p87 = scmp.ne.s32.totalorder %s78, %s79
      %p88 = scmp.eq.s32.totalorder %s26, 0
      %p89 = por %p87, %p88
      %p90 = scmp.ne.s32.totalorder %s78, %s79
      %p91 = scmp.eq.s32.totalorder %s27, 1
      %p92 = por %p90, %p91
      %p94 = scmp.ne.s32.totalorder %s79, %s93
      %p95 = scmp.eq.s32.totalorder %s27, 0
      %p96 = por %p94, %p95
      %s97 = ssub.s32 %s21, %s28
      %p98 = scmp.eq.s32.totalorder %s97, 0
      %s100 = sadd.s32 %s99, 1
      %s101 = scalar_select %p98, %s99, %s100
      %p104 = pneg %p98
      %p105 = scmp.eq.s32.totalorder %s21, 1
      %p106 = por %p104, %p105
      %p107 = scmp.ne.s32.totalorder %s99, %s102
      %p108 = scmp.eq.s32.totalorder %s21, 0
      %p109 = por %p107, %p108
      %p110 = scmp.ne.s32.totalorder %s99, %s102
      %p111 = scmp.eq.s32.totalorder %s26, 1
      %p112 = por %p110, %p111
      %p113 = scmp.ne.s32.totalorder %s102, %s103
      %p114 = scmp.eq.s32.totalorder %s26, 0
      %p115 = por %p113, %p114
      %p116 = scmp.ne.s32.totalorder %s102, %s103
      %p117 = scmp.eq.s32.totalorder %s27, 1
      %p118 = por %p116, %p117
      %p120 = scmp.ne.s32.totalorder %s103, %s119
      %p121 = scmp.eq.s32.totalorder %s27, 0
      %p122 = por %p120, %p121
      %s123 = ssub.s32 %s21, %s28
      %p124 = scmp.eq.s32.totalorder %s123, 0
      %s126 = sadd.s32 %s125, 1
      %s127 = scalar_select %p124, %s125, %s126
      %p130 = pneg %p124
      %p131 = scmp.eq.s32.totalorder %s21, 1
      %p132 = por %p130, %p131
      %p133 = scmp.ne.s32.totalorder %s125, %s128
      %p134 = scmp.eq.s32.totalorder %s21, 0
      %p135 = por %p133, %p134
      %p136 = scmp.ne.s32.totalorder %s125, %s128
      %p137 = scmp.eq.s32.totalorder %s26, 1
      %p138 = por %p136, %p137
      %p139 = scmp.ne.s32.totalorder %s128, %s129
      %p140 = scmp.eq.s32.totalorder %s26, 0
      %p141 = por %p139, %p140
      %p142 = scmp.ne.s32.totalorder %s128, %s129
      %p143 = scmp.eq.s32.totalorder %s27, 1
      %p144 = por %p142, %p143
      %p146 = scmp.ne.s32.totalorder %s129, %s145
      %p147 = scmp.eq.s32.totalorder %s27, 0
      %p148 = por %p146, %p147
      %p149 = scmp.le.s32.totalorder 1, %s21
      %p150 = scmp.lt.s32.totalorder %s21, 3
      %p151 = pnand %p149, %p150
      %p152 = pneg %p151
      // Predicated region
      $region9: #{tpu_custom_call.1} parent=5 // pred_check
        _
      $region10: #{tpu_custom_call.1} parent=5 // pred_check_branch
        %154 = sbr.rel (%p151) target = $region12
      $region11: #{tpu_custom_call.1} parent=5 // pred_region
        %s155 = ssub.s32 %s21, 1
        // Predicated region
        $region13: #{tpu_custom_call.1} parent=11 // pred_check
          %p156 = pneg %p68
        $region14: #{tpu_custom_call.1} parent=11 // pred_check_branch
          %158 = sbr.rel (%p156) target = $region16
        $region15: #{tpu_custom_call.1} parent=11 // pred_region
          %s160 = ssub.s32 512, 512
          %161 = vsyncadd [#allocation7], %s160
          %s162 = sshll.u32 [#allocation6], 4
          %s163 = int_to_ptr.vmem [resolvable:$true] %s162
          %168 = dma.hbm_to_vmem [thread:$0]  %s1, 512, %s163, [#allocation7], 128, 128, 8
        $region16: #{tpu_custom_call.1} parent=11 // pred_fallthru
          _
        // Predicated region
        $region17: #{tpu_custom_call.1} parent=11 // pred_check
          %p169 = pneg %p89
        $region18: #{tpu_custom_call.1} parent=11 // pred_check_branch
          %171 = sbr.rel (%p169) target = $region20
        $region19: #{tpu_custom_call.1} parent=11 // pred_region
          _
        $region20: #{tpu_custom_call.1} parent=11 // pred_fallthru
          _
      $region12: #{tpu_custom_call.1} parent=5 // pred_fallthru
        _
      %p172 = scmp.lt.s32.totalorder %s21, 2
      // Predicated region
      $region21: #{tpu_custom_call.1} parent=5 // pred_check
        %p173 = pneg %p172
      $region22: #{tpu_custom_call.1} parent=5 // pred_check_branch
        %175 = sbr.rel (%p173) target = $region24
      $region23: #{tpu_custom_call.1} parent=5 // pred_region
        // Predicated region
        $region25: #{tpu_custom_call.1} parent=23 // pred_check
          %p176 = pneg %p41
        $region26: #{tpu_custom_call.1} parent=23 // pred_check_branch
          %178 = sbr.rel (%p176) target = $region28
        $region27: #{tpu_custom_call.1} parent=23 // pred_region
          %s179 = sand.u32 %s31, 1
          %s180 = scalar_lea.sflag [#allocation4], %s179
          %s181 = sand.u32 %s31, 1
          %s182 = smul.addr %s181, 8
          %s183 = scalar_lea.vmem [#allocation3], %s182
          %s185 = ssub.s32 128, 128
          %186 = vsyncadd %s180, %s185
          %s187 = smul.addr %s21, 128
          %s188 = scalar_lea.hbm %s0, %s187
          %s190 = sshll.u32 %s183, 4
          %s191 = int_to_ptr.vmem [resolvable:$true] %s190
          %193 = dma.hbm_to_vmem [thread:$0]  %s188, 128, %s191, %s180
        $region28: #{tpu_custom_call.1} parent=23 // pred_fallthru
          _
      $region24: #{tpu_custom_call.1} parent=5 // pred_fallthru
        _
      %p194 = scmp.le.s32.totalorder 1, %s21
      %p195 = scmp.lt.s32.totalorder %s21, 3
      %p196 = pnand %p194, %p195
      %p197 = pneg %p196
      // Predicated region
      $region29: #{tpu_custom_call.1} parent=5 // pred_check
        _
      $region30: #{tpu_custom_call.1} parent=5 // pred_check_branch
        %199 = sbr.rel (%p196) target = $region32
      $region31: #{tpu_custom_call.1} parent=5 // pred_region
        %s200 = ssub.s32 %s21, 1
        %s201 = sand.u32 %s34, 1
        %s202 = scalar_lea.sflag [#allocation4], %s201
        %s203 = sand.u32 %s34, 1
        %s204 = smul.addr %s203, 8
        %s205 = scalar_lea.vmem [#allocation3], %s204
        // Predicated region
        $region33: #{tpu_custom_call.1} parent=31 // pred_check
          %p206 = pneg %p47
        $region34: #{tpu_custom_call.1} parent=31 // pred_check_branch
          %208 = sbr.rel (%p206) target = $region36
        $region35: #{tpu_custom_call.1} parent=31 // pred_region
          %209 = dma.done %s202, 128
        $region36: #{tpu_custom_call.1} parent=31 // pred_fallthru
          _
        // Predicated region
        $region37: #{tpu_custom_call.1} parent=31 // pred_check
          %p210 = pneg %p68
        $region38: #{tpu_custom_call.1} parent=31 // pred_check_branch
          %212 = sbr.rel (%p210) target = $region40
        $region39: #{tpu_custom_call.1} parent=31 // pred_region
          %213 = dma.done [#allocation7], 512
        $region40: #{tpu_custom_call.1} parent=31 // pred_fallthru
          _
        %s214 = sand.u32 %s34, 1
        %s215 = scalar_lea.sflag [#allocation4], %s214
        %s216 = sand.u32 %s34, 1
        %s217 = smul.addr %s216, 8
        %s218 = scalar_lea.vmem [#allocation3], %s217
        %p219 = pneg %p47
        %p220 = pneg %p44
        %p221 = pneg %p68
        %p222 = pneg %p65
        %p223 = pneg %p89
        %p224 = pneg %p86
        %p225 = pneg %p115
        %p226 = pneg %p112
        %s227 = sand.u32 %s102, 1
        %s228 = scalar_lea.sflag [#allocation5], %s227
        %s229 = sand.u32 %s102, 1
        %s230 = scalar_lea.vmem [#allocation8], %s229
        %p231 = pneg %p141
        %p232 = pneg %p138
        %s233 = sand.u32 %s128, 1
        %s234 = scalar_lea.sflag [#allocation10], %s233
        %s235 = sand.u32 %s128, 1
        %s236 = scalar_lea.vmem [#allocation9], %s235
        %v237 = vld [vmem:[%s205] sm:$0xff]
        %v238 = vld [vmem:[#allocation6] sm:$0xff]
        %v239 = vld [vmem:[#allocation6 + $0x8] sm:$0xff]
        %v240 = vld [vmem:[#allocation6 + $0x10] sm:$0xff]
        %v241 = vld [vmem:[#allocation6 + $0x18] sm:$0xff]
        %vm242 = vcmask 261120
        %v244 = vsel %vm242, %v237, 0
        %246 = vmatprep.subr.mxu0 0.0
        %247 = vmatpush1.msra.mxu0 0.0
        %248 = vmatprep.subr.mxu0 0.0
        %249 = vmatpush1.msra.mxu0 0.0
        %250 = vmatprep.subr.mxu0 0.0
        %251 = vmatpush1.msra.mxu0 0.0
        %252 = vmatprep.subr.mxu0 0.0
        %253 = vmatpush1.msra.mxu0 0.0
        %254 = vmatprep.subr.mxu0 0.0
        %255 = vmatpush1.msra.mxu0 0.0
        %256 = vmatprep.subr.mxu0 0.0
        %257 = vmatpush1.msra.mxu0 0.0
        %258 = vmatprep.subr.mxu0 0.0
        %259 = vmatpush1.msra.mxu0 0.0
        %260 = vmatprep.subr.mxu0 0.0
        %261 = vmatpush1.msra.mxu0 0.0
        %262 = vmatprep.subr.mxu0 0.0
        %263 = vmatpush1.msra.mxu0 0.0
        %264 = vmatprep.subr.mxu0 0.0
        %265 = vmatpush1.msra.mxu0 0.0
        %266 = vmatprep.subr.mxu0 0.0
        %267 = vmatpush1.msra.mxu0 0.0
        %268 = vmatprep.subr.mxu0 0.0
        %269 = vmatpush1.msra.mxu0 0.0
        %270 = vmatprep.subr.mxu0 0.0
        %271 = vmatpush1.msra.mxu0 %v241
        %272 = vmatprep.subr.mxu0 0.0
        %273 = vmatpush1.msra.mxu0 %v240
        %274 = vmatprep.subr.mxu0 0.0
        %275 = vmatpush1.msra.mxu0 %v239
        %276 = vmatprep.subr.mxu0 0.0
        %277 = vmatpush1.msra.mxu0 %v238
        %278 = vmatprep.subr.mxu0 0.0
        %279 = vmatpush2.msra.mxu0 0.0
        %280 = vmatprep.subr.mxu0 0.0
        %281 = vmatpush2.msra.mxu0 0.0
        %282 = vmatprep.subr.mxu0 0.0
        %283 = vmatpush2.msra.mxu0 0.0
        %284 = vmatprep.subr.mxu0 0.0
        %285 = vmatpush2.msra.mxu0 0.0
        %286 = vmatprep.subr.mxu0 0.0
        %287 = vmatpush2.msra.mxu0 0.0
        %288 = vmatprep.subr.mxu0 0.0
        %289 = vmatpush2.msra.mxu0 0.0
        %290 = vmatprep.subr.mxu0 0.0
        %291 = vmatpush2.msra.mxu0 0.0
        %292 = vmatprep.subr.mxu0 0.0
        %293 = vmatpush2.msra.mxu0 0.0
        %294 = vmatprep.subr.mxu0 0.0
        %295 = vmatpush2.msra.mxu0 0.0
        %296 = vmatprep.subr.mxu0 0.0
        %297 = vmatpush2.msra.mxu0 0.0
        %298 = vmatprep.subr.mxu0 0.0
        %299 = vmatpush2.msra.mxu0 0.0
        %300 = vmatprep.subr.mxu0 0.0
        %301 = vmatpush2.msra.mxu0 0.0
        %302 = vmatprep.subr.mxu0 0.0
        %303 = vmatpush2.msra.mxu0 0.0
        %304 = vmatprep.subr.mxu0 0.0
        %305 = vmatpush2.msra.mxu0 0.0
        %306 = vmatprep.subr.mxu0 0.0
        %307 = vmatpush2.msra.mxu0 0.0
        %308 = vmatprep.subr.mxu0 0.0
        %309 = vmatpush2.msra.mxu0 0.0
        %310 = vmatprep.mubr.f32.mxu0 0.0
        %311 = vmatmul.mubr.f32.gmra.mxu0 %v244
        %v312 = vpop.f32.mrf.mxu0
        %v313 = vadd.f32 0.0, %v312
        %v314 = vpop.f32.mrf.mxu0
        %315 = vdwg.mxu0
        %v316 = vtanh.pop %v313
        %317 = vst [vmem:[#allocation2] sm:$0xff] %v316
        %v318 = vld [vmem:[%s2] sm:$0x1]
        %v319 = vld [vmem:[%s205] sm:$0xff]
        %v320 = vld [vmem:[#allocation2] sm:$0xff]
        %321 = vmatprep.subr.mxu0 0.0
        %322 = vmatpush1.xpose.msra.mxu0 0.0
        %323 = vmatprep.subr.mxu0 0.0
        %324 = vmatpush1.xpose.msra.mxu0 0.0
        %325 = vmatprep.subr.mxu0 0.0
        %326 = vmatpush1.xpose.msra.mxu0 0.0
        %327 = vmatprep.subr.mxu0 0.0
        %328 = vmatpush1.xpose.msra.mxu0 0.0
        %329 = vmatprep.subr.mxu0 0.0
        %330 = vmatpush1.xpose.msra.mxu0 0.0
        %331 = vmatprep.subr.mxu0 0.0
        %332 = vmatpush1.xpose.msra.mxu0 0.0
        %333 = vmatprep.subr.mxu0 0.0
        %334 = vmatpush1.xpose.msra.mxu0 0.0
        %335 = vmatprep.subr.mxu0 0.0
        %336 = vmatpush1.xpose.msra.mxu0 0.0
        %337 = vmatprep.subr.mxu0 0.0
        %338 = vmatpush1.xpose.msra.mxu0 0.0
        %339 = vmatprep.subr.mxu0 0.0
        %340 = vmatpush1.xpose.msra.mxu0 0.0
        %341 = vmatprep.subr.mxu0 0.0
        %342 = vmatpush1.xpose.msra.mxu0 0.0
        %343 = vmatprep.subr.mxu0 0.0
        %344 = vmatpush1.xpose.msra.mxu0 0.0
        %345 = vmatprep.subr.mxu0 0.0
        %346 = vmatpush1.xpose.msra.mxu0 0.0
        %347 = vmatprep.subr.mxu0 0.0
        %348 = vmatpush1.xpose.msra.mxu0 0.0
        %349 = vmatprep.subr.mxu0 0.0
        %350 = vmatpush1.xpose.msra.mxu0 0.0
        %351 = vmatprep.subr.mxu0 0.0
        %352 = vmatpush1.xpose.msra.mxu0 %v320
        %353 = vmatprep.subr.mxu0 0.0
        %354 = vmatpush2.xpose.msra.mxu0 0.0
        %355 = vmatprep.subr.mxu0 0.0
        %356 = vmatpush2.xpose.msra.mxu0 0.0
        %357 = vmatprep.subr.mxu0 0.0
        %358 = vmatpush2.xpose.msra.mxu0 0.0
        %359 = vmatprep.subr.mxu0 0.0
        %360 = vmatpush2.xpose.msra.mxu0 0.0
        %361 = vmatprep.subr.mxu0 0.0
        %362 = vmatpush2.xpose.msra.mxu0 0.0
        %363 = vmatprep.subr.mxu0 0.0
        %364 = vmatpush2.xpose.msra.mxu0 0.0
        %365 = vmatprep.subr.mxu0 0.0
        %366 = vmatpush2.xpose.msra.mxu0 0.0
        %367 = vmatprep.subr.mxu0 0.0
        %368 = vmatpush2.xpose.msra.mxu0 0.0
        %369 = vmatprep.subr.mxu0 0.0
        %370 = vmatpush2.xpose.msra.mxu0 0.0
        %371 = vmatprep.subr.mxu0 0.0
        %372 = vmatpush2.xpose.msra.mxu0 0.0
        %373 = vmatprep.subr.mxu0 0.0
        %374 = vmatpush2.xpose.msra.mxu0 0.0
        %375 = vmatprep.subr.mxu0 0.0
        %376 = vmatpush2.xpose.msra.mxu0 0.0
        %377 = vmatprep.subr.mxu0 0.0
        %378 = vmatpush2.xpose.msra.mxu0 0.0
        %379 = vmatprep.subr.mxu0 0.0
        %380 = vmatpush2.xpose.msra.mxu0 0.0
        %381 = vmatprep.subr.mxu0 0.0
        %382 = vmatpush2.xpose.msra.mxu0 0.0
        %383 = vmatprep.subr.mxu0 0.0
        %384 = vmatpush2.xpose.msra.mxu0 0.0
        %385 = vmatprep.mubr.f32.mxu0 0.0
        %386 = vmatmul.mubr.f32.gmra.mxu0 %v318
        %v387 = vpop.f32.mrf.mxu0
        %v388 = vadd.f32 0.0, %v387
        %v389 = vpop.f32.mrf.mxu0
        %390 = vdwg.mxu0
        %vm391 = vcmask 57344
        %v392 = vsel %vm391, %v388, -inf
        %393 = vmax.xlane.f32.xlu0 %v392
        %v394 = vpop.xlane.xlu0 %393
        %v395 = vsub.f32 %v388, %v394
        %v396 = vmul.f32 %v395, 1.442695
        %v397 = vpow.pop %v396
        %v398 = vsel %vm391, %v397, 0.0
        %399 = vadd.xlane.f32.xlu0 %v398
        %v400 = vpop.xlane.xlu0 %399
        %v401 = vrcp.pop %v400
        %v402 = vmul.f32 %v397, %v401
        %vm403 = vcmask 64512
        %v405 = vsel %vm403, %v402, 0
        %407 = vmatprep.subr.mxu0 0.0
        %408 = vmatpush1.msra.mxu0 0.0
        %409 = vmatprep.subr.mxu0 0.0
        %410 = vmatpush1.msra.mxu0 0.0
        %411 = vmatprep.subr.mxu0 0.0
        %412 = vmatpush1.msra.mxu0 0.0
        %413 = vmatprep.subr.mxu0 0.0
        %414 = vmatpush1.msra.mxu0 0.0
        %415 = vmatprep.subr.mxu0 0.0
        %416 = vmatpush1.msra.mxu0 0.0
        %417 = vmatprep.subr.mxu0 0.0
        %418 = vmatpush1.msra.mxu0 0.0
        %419 = vmatprep.subr.mxu0 0.0
        %420 = vmatpush1.msra.mxu0 0.0
        %421 = vmatprep.subr.mxu0 0.0
        %422 = vmatpush1.msra.mxu0 0.0
        %423 = vmatprep.subr.mxu0 0.0
        %424 = vmatpush1.msra.mxu0 0.0
        %425 = vmatprep.subr.mxu0 0.0
        %426 = vmatpush1.msra.mxu0 0.0
        %427 = vmatprep.subr.mxu0 0.0
        %428 = vmatpush1.msra.mxu0 0.0
        %429 = vmatprep.subr.mxu0 0.0
        %430 = vmatpush1.msra.mxu0 0.0
        %431 = vmatprep.subr.mxu0 0.0
        %432 = vmatpush1.msra.mxu0 0.0
        %433 = vmatprep.subr.mxu0 0.0
        %434 = vmatpush1.msra.mxu0 0.0
        %435 = vmatprep.subr.mxu0 0.0
        %436 = vmatpush1.msra.mxu0 0.0
        %437 = vmatprep.subr.mxu0 0.0
        %438 = vmatpush1.msra.mxu0 %v319
        %439 = vmatprep.subr.mxu0 0.0
        %440 = vmatpush2.msra.mxu0 0.0
        %441 = vmatprep.subr.mxu0 0.0
        %442 = vmatpush2.msra.mxu0 0.0
        %443 = vmatprep.subr.mxu0 0.0
        %444 = vmatpush2.msra.mxu0 0.0
        %445 = vmatprep.subr.mxu0 0.0
        %446 = vmatpush2.msra.mxu0 0.0
        %447 = vmatprep.subr.mxu0 0.0
        %448 = vmatpush2.msra.mxu0 0.0
        %449 = vmatprep.subr.mxu0 0.0
        %450 = vmatpush2.msra.mxu0 0.0
        %451 = vmatprep.subr.mxu0 0.0
        %452 = vmatpush2.msra.mxu0 0.0
        %453 = vmatprep.subr.mxu0 0.0
        %454 = vmatpush2.msra.mxu0 0.0
        %455 = vmatprep.subr.mxu0 0.0
        %456 = vmatpush2.msra.mxu0 0.0
        %457 = vmatprep.subr.mxu0 0.0
        %458 = vmatpush2.msra.mxu0 0.0
        %459 = vmatprep.subr.mxu0 0.0
        %460 = vmatpush2.msra.mxu0 0.0
        %461 = vmatprep.subr.mxu0 0.0
        %462 = vmatpush2.msra.mxu0 0.0
        %463 = vmatprep.subr.mxu0 0.0
        %464 = vmatpush2.msra.mxu0 0.0
        %465 = vmatprep.subr.mxu0 0.0
        %466 = vmatpush2.msra.mxu0 0.0
        %467 = vmatprep.subr.mxu0 0.0
        %468 = vmatpush2.msra.mxu0 0.0
        %469 = vmatprep.subr.mxu0 0.0
        %470 = vmatpush2.msra.mxu0 0.0
        %471 = vmatprep.mubr.f32.mxu0 0.0
        %472 = vmatmul.mubr.f32.gmra.mxu0 %v405
        %v473 = vpop.f32.mrf.mxu0
        %v474 = vadd.f32 0.0, %v473
        %v475 = vpop.f32.mrf.mxu0
        %476 = vdwg.mxu0
        %vm477 = vcmask 253952
        %478 = vst.msk [vmem:[%s230] sm:$0x1] %vm477, %v474
        %479 = vst.msk [vmem:[%s236] sm:$0x1] %vm391, %v402
        %s480 = sand.u32 %s102, 1
        %s481 = scalar_lea.sflag [#allocation5], %s480
        %s482 = sand.u32 %s102, 1
        %s483 = scalar_lea.vmem [#allocation8], %s482
        %s484 = sand.u32 %s128, 1
        %s485 = scalar_lea.sflag [#allocation10], %s484
        %s486 = sand.u32 %s128, 1
        %s487 = scalar_lea.vmem [#allocation9], %s486
        // Predicated region
        $region41: #{tpu_custom_call.1} parent=31 // pred_check
          %p488 = pneg %p112
        $region42: #{tpu_custom_call.1} parent=31 // pred_check_branch
          %490 = sbr.rel (%p488) target = $region44
        $region43: #{tpu_custom_call.1} parent=31 // pred_region
          %s492 = ssub.s32 16, 16
          %493 = vsyncadd %s481, %s492
          %s494 = smul.addr %s26, 16
          %s495 = scalar_lea.hbm %s3, %s494
          %s497 = sshll.u32 %s483, 4
          %s498 = int_to_ptr.vmem [resolvable:$true] %s497
          %500 = dma.vmem_to_hbm [thread:$0]  %s498, 16, %s495, %s481
        $region44: #{tpu_custom_call.1} parent=31 // pred_fallthru
          _
        // Predicated region
        $region45: #{tpu_custom_call.1} parent=31 // pred_check
          %p501 = pneg %p138
        $region46: #{tpu_custom_call.1} parent=31 // pred_check_branch
          %503 = sbr.rel (%p501) target = $region48
        $region47: #{tpu_custom_call.1} parent=31 // pred_region
          %s505 = ssub.s32 16, 16
          %506 = vsyncadd %s485, %s505
          %s507 = smul.addr %s26, 16
          %s508 = scalar_lea.hbm %s4, %s507
          %s510 = sshll.u32 %s487, 4
          %s511 = int_to_ptr.vmem [resolvable:$true] %s510
          %513 = dma.vmem_to_hbm [thread:$0]  %s511, 16, %s508, %s485
        $region48: #{tpu_custom_call.1} parent=31 // pred_fallthru
          _
      $region32: #{tpu_custom_call.1} parent=5 // pred_fallthru
        _
      %p514 = scmp.le.s32.totalorder 2, %s21
      // Predicated region
      $region49: #{tpu_custom_call.1} parent=5 // pred_check
        %p515 = pneg %p514
      $region50: #{tpu_custom_call.1} parent=5 // pred_check_branch
        %517 = sbr.rel (%p515) target = $region52
      $region51: #{tpu_custom_call.1} parent=5 // pred_region
        %s518 = ssub.s32 %s21, 2
        // Predicated region
        $region53: #{tpu_custom_call.1} parent=51 // pred_check
          %p519 = pneg %p118
        $region54: #{tpu_custom_call.1} parent=51 // pred_check_branch
          %521 = sbr.rel (%p519) target = $region56
        $region55: #{tpu_custom_call.1} parent=51 // pred_region
          %s522 = sand.u32 %s103, 1
          %s523 = scalar_lea.sflag [#allocation5], %s522
          %s524 = sand.u32 %s103, 1
          %s525 = scalar_lea.vmem [#allocation8], %s524
          %526 = dma.done %s523, 16
        $region56: #{tpu_custom_call.1} parent=51 // pred_fallthru
          _
        // Predicated region
        $region57: #{tpu_custom_call.1} parent=51 // pred_check
          %p527 = pneg %p144
        $region58: #{tpu_custom_call.1} parent=51 // pred_check_branch
          %529 = sbr.rel (%p527) target = $region60
        $region59: #{tpu_custom_call.1} parent=51 // pred_region
          %s530 = sand.u32 %s129, 1
          %s531 = scalar_lea.sflag [#allocation10], %s530
          %s532 = sand.u32 %s129, 1
          %s533 = scalar_lea.vmem [#allocation9], %s532
          %534 = dma.done %s531, 16
        $region60: #{tpu_custom_call.1} parent=51 // pred_fallthru
          _
      $region52: #{tpu_custom_call.1} parent=5 // pred_fallthru
        _
    $region6: #{tpu_custom_call.1} parent=1 // loop_footer
      %s25 = sadd.s32 1, %s21
    $region7: #{tpu_custom_call.1} parent=1 // loop_footer_branch
      %20 = sbr.rel target = $region3
    $region8: #{tpu_custom_call.1} parent=1 // loop_exit
      _
    %535 = vsyncpa [#allocation4], 1
    %s536 = scalar_lea.sflag [#allocation4], 1
    %537 = vsyncpa %s536, 1
    %538 = vsyncpa [#allocation7], 1
    %539 = vsyncpa [#allocation5], 1
    %s540 = scalar_lea.sflag [#allocation5], 1
    %541 = vsyncpa %s540, 1
    %542 = vsyncpa [#allocation10], 1
    %s543 = scalar_lea.sflag [#allocation10], 1
    %544 = vsyncpa %s543, 1

</llo_original>
